<compile_context>
chip_gen: v7x
topology: tpu7x:2x2x1
jax: 0.10.0
libtpu: 0.0.40
codegen_flags: <defaults>
</compile_context>

<pallas_src>
import functools
import math

import jax
import jax.numpy as jnp
from jax import lax
from jax.experimental import pallas as pl
from jax.experimental.pallas import tpu as pltpu


def _round_up(x: int, m: int) -> int:
    return (x + m - 1) // m * m


def _vmem_capacity_bytes() -> int:
    """Generation-aware VMEM capacity; conservative (v7x) fallback."""
    try:
        return int(pltpu.get_tpu_info().vmem_capacity_bytes)
    except Exception:
        return 64 << 20


# ---------------------------------------------------------------------------
# Path "onehot": small vocab, table resident in VMEM, one-hot @ table on MXU.
# ---------------------------------------------------------------------------
def _emb_onehot_kernel(ids_ref, emb_ref, out_ref, *, scale, vocab_size):
    # ids_ref: (T, 1) int32 in VMEM; emb_ref: (vocab, d_model) resident in VMEM.
    ids = ids_ref[...]
    ids = jnp.minimum(jnp.maximum(ids, 0), vocab_size - 1)        # never OOB
    cols = lax.broadcasted_iota(jnp.int32, (ids.shape[0], vocab_size), 1)
    one_hot = jnp.where(ids == cols, 1.0, 0.0).astype(emb_ref.dtype)
    precision = (lax.Precision.HIGHEST
                 if emb_ref.dtype == jnp.float32 else None)
    rows = jnp.dot(one_hot, emb_ref[...],
                   preferred_element_type=jnp.float32, precision=precision)
    out_ref[...] = (rows * scale).astype(out_ref.dtype)


# ---------------------------------------------------------------------------
# Path "gather": table resident in VMEM; rows gathered in groups of 8/16 so
# every output store is a dense (group, d_model) write (no 1-row masked vst).
# ---------------------------------------------------------------------------
def _emb_gather_kernel(ids_ref, emb_ref, out_ref, *, scale, tokens_per_block,
                       vocab_size, group):
    base = pl.program_id(0) * tokens_per_block
    n_groups = tokens_per_block // group

    def gather_group(g, carry):
        start = pl.multiple_of(g * group, group)
        rows = []
        for j in range(group):                    # Python-unrolled row loads
            tok = ids_ref[base + start + j]
            tok = jnp.minimum(jnp.maximum(tok, 0), vocab_size - 1)
            rows.append(emb_ref[pl.ds(tok, 1), :])
        block = jnp.concatenate(rows, axis=0).astype(jnp.float32)
        out_ref[pl.ds(start, group), :] = (block * scale).astype(out_ref.dtype)
        return carry

    lax.fori_loop(0, n_groups, gather_group, 0, unroll=True)


# ---------------------------------------------------------------------------
# Path "hbm": table stays in HBM; per-row async-copy gathers pipelined through
# a small round-robin pool of DMA semaphores, then one dense scaled store.
# ---------------------------------------------------------------------------
_NSEM = 8  # in-flight row DMAs / semaphore pool size


def _emb_hbm_kernel(ids_ref, emb_hbm, out_ref, rows_ref, sems, *, scale,
                    tokens_per_block, vocab_size):
    T = tokens_per_block
    base = pl.program_id(0) * T

    def issue(t):
        tok = ids_ref[base + t]
        tok = jnp.minimum(jnp.maximum(tok, 0), vocab_size - 1)    # never OOB
        pltpu.make_async_copy(emb_hbm.at[tok], rows_ref.at[t],
                              sems.at[t % _NSEM]).start()

    def retire(t):
        # src index is irrelevant for the wait; shapes/bytes match.
        pltpu.make_async_copy(emb_hbm.at[0], rows_ref.at[t],
                              sems.at[t % _NSEM]).wait()

    # Prime the pool with _NSEM in-flight row gathers.
    def prime(t, c):
        issue(t)
        return c
    lax.fori_loop(0, _NSEM, prime, 0, unroll=True)

    # Steady state: retire row t, immediately reuse its sem slot for row t+NSEM.
    def steady(t, c):
        retire(t)
        issue(t + _NSEM)
        return c
    lax.fori_loop(0, T - _NSEM, steady, 0, unroll=min(8, max(T - _NSEM, 1)))

    # Drain the last _NSEM rows.
    def drain(t, c):
        retire(t)
        return c
    lax.fori_loop(T - _NSEM, T, drain, 0, unroll=True)

    out_ref[...] = (rows_ref[...].astype(jnp.float32) * scale).astype(out_ref.dtype)


# ---------------------------------------------------------------------------
# Host-side wrapper.
# ---------------------------------------------------------------------------
def token_embeddings(x_ids: jax.Array, emb_table: jax.Array, *,
                     tokens_per_block: int = 256,
                     onehot_max_vocab: int = 1024,
                     path: str | None = None) -> jax.Array:
    """x_ids: int (B, S); emb_table: (vocab_size, d_model).

    Returns (B, S, d_model) = emb_table[x_ids] * sqrt(d_model).
    path: None (auto) | "onehot" | "gather" | "hbm".
    """
    assert x_ids.ndim == 2, "Input tensor must be of shape (B, seq_len)"
    B, S = x_ids.shape
    vocab_size, d_model = emb_table.shape
    n_tok = B * S
    scale = float(math.sqrt(d_model))
    out_dtype = emb_table.dtype
    ebytes = emb_table.dtype.itemsize

    # Token tile: multiple of the f32/bf16 sublane group so grouped stores are
    # vreg-aligned and the output block is sublane/lane dense.
    group = 8 if ebytes >= 4 else 16
    T = min(int(tokens_per_block), _round_up(n_tok, group))
    T = max(group, _round_up(T, group))
    n_pad = _round_up(n_tok, T)
    n_blocks = n_pad // T

    flat_ids = x_ids.reshape(n_tok).astype(jnp.int32)
    if n_pad != n_tok:
        flat_ids = jnp.concatenate(
            [flat_ids, jnp.zeros((n_pad - n_tok,), jnp.int32)])

    # Generation-aware VMEM budget for the resident-table fast paths.
    vmem_cap = _vmem_capacity_bytes()
    table_bytes = vocab_size * d_model * ebytes
    out_tile_bytes = T * d_model * ebytes
    # Blocked inputs/outputs are double-buffered by default, so the resident
    # table costs 2x table_bytes (honest accounting; pl.Buffered(1) would
    # halve it at the cost of lowering-compat risk).
    resident_need = (2 * table_bytes + 2 * out_tile_bytes + 2 * T * 4
                     + (2 << 20))
    table_fits_vmem = resident_need <= vmem_cap - (8 << 20)

    if path is None:
        if table_fits_vmem and vocab_size <= onehot_max_vocab:
            path = "onehot"
        elif table_fits_vmem:
            path = "gather"
        else:
            path = "hbm"

    out_shape = jax.ShapeDtypeStruct((n_pad, d_model), out_dtype)
    sem = ("parallel",)  # token-tile axis is independent -> megacore-friendly

    if path == "onehot":
        kernel = functools.partial(_emb_onehot_kernel, scale=scale,
                                   vocab_size=vocab_size)
        grid_spec = pltpu.PrefetchScalarGridSpec(
            num_scalar_prefetch=0,
            grid=(n_blocks,),
            in_specs=[pl.BlockSpec((T, 1), lambda i: (i, 0)),
                      pl.BlockSpec((vocab_size, d_model), lambda i: (0, 0))],
            out_specs=pl.BlockSpec((T, d_model), lambda i: (i, 0)),
        )
        vmem_limit = min(vmem_cap - (2 << 20),
                         max(32 << 20,
                             resident_need + T * vocab_size * 4 + (4 << 20)))
        out_flat = pl.pallas_call(
            kernel, out_shape=out_shape, grid_spec=grid_spec,
            compiler_params=pltpu.CompilerParams(
                dimension_semantics=sem, vmem_limit_bytes=int(vmem_limit)),
        )(flat_ids.reshape(n_pad, 1), emb_table)

    elif path == "gather":
        kernel = functools.partial(_emb_gather_kernel, scale=scale,
                                   tokens_per_block=T, vocab_size=vocab_size,
                                   group=group)
        grid_spec = pltpu.PrefetchScalarGridSpec(
            num_scalar_prefetch=1,                     # token ids -> SMEM
            grid=(n_blocks,),
            in_specs=[pl.BlockSpec((vocab_size, d_model),
                                   lambda i, ids: (0, 0))],
            out_specs=pl.BlockSpec((T, d_model), lambda i, ids: (i, 0)),
        )
        vmem_limit = min(vmem_cap - (2 << 20),
                         max(32 << 20, resident_need + (4 << 20)))
        out_flat = pl.pallas_call(
            kernel, out_shape=out_shape, grid_spec=grid_spec,
            compiler_params=pltpu.CompilerParams(
                dimension_semantics=sem, vmem_limit_bytes=int(vmem_limit)),
        )(flat_ids, emb_table)

    elif path == "hbm":
        kernel = functools.partial(_emb_hbm_kernel, scale=scale,
                                   tokens_per_block=T, vocab_size=vocab_size)
        grid_spec = pltpu.PrefetchScalarGridSpec(
            num_scalar_prefetch=1,                     # token ids -> SMEM
            grid=(n_blocks,),
            in_specs=[pl.BlockSpec(memory_space=pl.ANY)],   # table stays in HBM
            out_specs=pl.BlockSpec((T, d_model), lambda i, ids: (i, 0)),
            scratch_shapes=[pltpu.VMEM((T, d_model), emb_table.dtype),
                            pltpu.SemaphoreType.DMA((_NSEM,))],
        )
        hbm_need = T * d_model * ebytes + 2 * out_tile_bytes + (2 << 20)
        vmem_limit = min(vmem_cap - (2 << 20), max(32 << 20, 2 * hbm_need))
        out_flat = pl.pallas_call(
            kernel, out_shape=out_shape, grid_spec=grid_spec,
            compiler_params=pltpu.CompilerParams(
                dimension_semantics=sem, vmem_limit_bytes=int(vmem_limit)),
        )(flat_ids, emb_table)

    else:
        raise ValueError(f"unknown path: {path!r}")

    if n_pad != n_tok:
        out_flat = out_flat[:n_tok]
    return out_flat.reshape(B, S, d_model)


if __name__ == "__main__":
    # Small deterministic example consistent with the module's forward:
    #   x: (B, seq_len) integer token ids, d_model=128, vocab_size=64.
    B, S = 2, 8
    d_model = 128
    vocab_size = 64

    key = jax.random.PRNGKey(0)
    k_ids, k_emb, k_ids2 = jax.random.split(key, 3)

    x = jax.random.randint(k_ids, (B, S), 0, vocab_size, dtype=jnp.int32)
    # Deterministic "init" of nn.Embedding weights (synthetic, standard normal).
    emb_table = jax.random.normal(k_emb, (vocab_size, d_model),
                                  dtype=jnp.float32)

    ref = emb_table[x] * math.sqrt(d_model)

    # Exercise every path plus the automatic selection.
    for p in ("onehot", "gather", "hbm", None):
        out = jax.block_until_ready(token_embeddings(x, emb_table, path=p))
        assert out.shape == (B, S, d_model)
        assert jnp.allclose(out, ref, atol=1e-3, rtol=1e-4), \
            f"mismatch vs reference on path={p}"

    # Ragged token count (exercises tile padding) with the auto-selected path.
    x2 = jax.random.randint(k_ids2, (3, 5), 0, vocab_size, dtype=jnp.int32)
    ref2 = emb_table[x2] * math.sqrt(d_model)
    out2 = jax.block_until_ready(token_embeddings(x2, emb_table))
    assert out2.shape == (3, 5, d_model)
    assert jnp.allclose(out2, ref2, atol=1e-3, rtol=1e-4), \
        "mismatch vs reference on padded shape"

    print("KERNEL_OK")
</pallas_src>

<mosaic_0001>
module attributes {stable_mosaic.version = 11 : i64} {
  func.func @_emb_onehot_kernel(%arg0: i32, %arg1: memref<16x1xi32, #tpu.memory_space<vmem>>, %arg2: memref<64x128xf32, #tpu.memory_space<vmem>>, %arg3: memref<16x128xf32, #tpu.memory_space<vmem>>) attributes {dimension_semantics = [#tpu.dimension_semantics<parallel>], iteration_bounds = array<i64: 1>, scalar_prefetch = 0 : i64, scratch_operands = 0 : i64, tpu.core_type = #tpu.core_type<tc>, window_params = [{transform_indices = @transform_0, window_bounds = array<i64: 16, 1>}, {pipeline_mode = #tpu.pipeline_mode<synchronous>, transform_indices = @transform_1, window_bounds = array<i64: 64, 128>}, {transform_indices = @transform_2, window_bounds = array<i64: 16, 128>}]} {
    %c0 = arith.constant 0 : index
    %c0_0 = arith.constant 0 : index
    %0 = vector.load %arg1[%c0, %c0_0] : memref<16x1xi32, #tpu.memory_space<vmem>>, vector<16x1xi32>
    %c0_i32 = arith.constant 0 : i32
    %1 = vector.broadcast %c0_i32 : i32 to vector<16x1xi32>
    %2 = arith.maxsi %0, %1 : vector<16x1xi32>
    %c63_i32 = arith.constant 63 : i32
    %3 = vector.broadcast %c63_i32 : i32 to vector<16x1xi32>
    %4 = arith.minsi %2, %3 : vector<16x1xi32>
    %5 = tpu.iota {dimensions = array<i32: 1>} : vector<16x64xi32>
    %6 = vector.broadcast %4 : vector<16x1xi32> to vector<16x64xi32>
    %7 = arith.cmpi eq, %6, %5 : vector<16x64xi32>
    %cst = arith.constant 1.000000e+00 : f32
    %cst_1 = arith.constant 0.000000e+00 : f32
    %8 = vector.broadcast %cst : f32 to vector<16x64xf32>
    %9 = vector.broadcast %cst_1 : f32 to vector<16x64xf32>
    %10 = arith.select %7, %8, %9 : vector<16x64xi1>, vector<16x64xf32>
    %c0_2 = arith.constant 0 : index
    %c0_3 = arith.constant 0 : index
    %11 = vector.load %arg2[%c0_2, %c0_3] : memref<64x128xf32, #tpu.memory_space<vmem>>, vector<64x128xf32>
    %cst_4 = arith.constant dense<0.000000e+00> : vector<16x128xf32>
    %12 = tpu.matmul %10, %11, %cst_4 {dimension_numbers = #tpu.dot_dimension_numbers<[1], [0], [0], [1], [0, 0, 1, 1], [], []>, precision = #tpu.contract_precision<fp32>} : vector<16x64xf32>, vector<64x128xf32>, vector<16x128xf32> -> vector<16x128xf32>
    %cst_5 = arith.constant 11.3137083 : f32
    %13 = vector.broadcast %cst_5 : f32 to vector<16x128xf32>
    %14 = arith.mulf %12, %13 : vector<16x128xf32>
    %c0_6 = arith.constant 0 : index
    %c0_7 = arith.constant 0 : index
    %15 = vector.load %arg3[%c0_6, %c0_7] : memref<16x128xf32, #tpu.memory_space<vmem>>, vector<16x128xf32>
    tpu.vector_store %arg3[%c0_6, %c0_7], %14 {strides = array<i32>} : memref<16x128xf32, #tpu.memory_space<vmem>>, vector<16x128xf32>,
    return
  }
  func.func @transform_0(%arg0: i32) -> (i32, i32) {
    %c0_i32 = arith.constant 0 : i32
    %c0_i32_0 = arith.constant 0 : i32
    return %arg0, %c0_i32 : i32, i32
  }
  func.func @transform_1(%arg0: i32) -> (i32, i32) {
    %c0_i32 = arith.constant 0 : i32
    %c0_i32_0 = arith.constant 0 : i32
    %c0_i32_1 = arith.constant 0 : i32
    return %c0_i32, %c0_i32_0 : i32, i32
  }
  func.func @transform_2(%arg0: i32) -> (i32, i32) {
    %c0_i32 = arith.constant 0 : i32
    %c0_i32_0 = arith.constant 0 : i32
    return %arg0, %c0_i32 : i32, i32
  }
}

</mosaic_0001>

<llo_original>
// kernel: tpu_custom_call.1
$region0: #{tpu_custom_call.1}
  #allocation0 [shape = 'u32[]', space=smem, size = 0x4, offset = 0x4, fixed_abs, tag = 'smem constant byte address 0x4 - core index']
  #allocation1 [shape = 'u32[144,128]{1,0:T(1,128)}', space=vmem, size = 0x12000, scoped, tag = 'internal scratch']
  %s0 = inlined_call_operand.vmem [shape: s32[16,1], index: 0, kind: input, shape index: {}]
  %s1 = inlined_call_operand.hbm [shape: f32[64,128], index: 1, kind: input, shape index: {}]
  %s2 = inlined_call_operand.hbm [shape: f32[16,128], index: 2, kind: output, shape index: {}]
  %s3 = sld [smem:[#allocation0]]
  $region22: #{tpu_custom_call.1} parent=0
    _
  %s5 = ssub.s32 1, %s3
  %s6 = scalar_select 0, %s5, %s3
  $region1: #{tpu_custom_call.1} parent=0
    #allocation2 [shape = 'u8[32768]{0}', space=vmem, size = 0x8000, scoped, tag = 'input window, operand 1, single buffered']
    #allocation3 [shape = 's32[1]{0}', space=sflag, size = 0x4, scoped, tag = 'scoped memory for tpu_custom_call.1']
    #allocation4 [shape = 's32[1]{0}', space=sflag, size = 0x4, scoped, tag = 'scoped memory for tpu_custom_call.1']
    #allocation5 [shape = 'u8[8192]{0}', space=vmem, size = 0x2000, scoped, tag = 'output window, operand 0, single buffered']
    %7 = vsyncpa [#allocation3], 0
    %8 = vsyncpa [#allocation4], 0
    // Predicated region
    $region2: #{tpu_custom_call.1} parent=1 // pred_check
      _
    $region3: #{tpu_custom_call.1} parent=1 // pred_check_branch
      %10 = sbr.rel (0) target = $region5
    $region4: #{tpu_custom_call.1} parent=1 // pred_region
      _
    $region5: #{tpu_custom_call.1} parent=1 // pred_fallthru
      _
    // Predicated region
    $region6: #{tpu_custom_call.1} parent=1 // pred_check
      _
    $region7: #{tpu_custom_call.1} parent=1 // pred_check_branch
      %12 = sbr.rel (0) target = $region9
    $region8: #{tpu_custom_call.1} parent=1 // pred_region
      %s14 = ssub.s32 1024, 1024
      %15 = vsyncadd [#allocation3], %s14
      %s16 = sshll.u32 [#allocation2], 4
      %s17 = int_to_ptr.vmem [resolvable:$true] %s16
      %22 = dma.hbm_to_vmem [thread:$0]  %s1, 1024, %s17, [#allocation3], 128, 128, 8
    $region9: #{tpu_custom_call.1} parent=1 // pred_fallthru
      _
    // Predicated region
    $region10: #{tpu_custom_call.1} parent=1 // pred_check
      _
    $region11: #{tpu_custom_call.1} parent=1 // pred_check_branch
      %24 = sbr.rel (0) target = $region13
    $region12: #{tpu_custom_call.1} parent=1 // pred_region
      %25 = dma.done [#allocation3], 1024
    $region13: #{tpu_custom_call.1} parent=1 // pred_fallthru
      _
    %v26 = vld [vmem:[%s0] sm:$0xff]
    %v27 = vld [vmem:[%s0 + $0x8] sm:$0xff]
    %vm28 = vcmp.gt.s32.totalorder %v26, 0
    %v29 = vsel %vm28, %v26, 0
    %vm30 = vcmp.gt.s32.totalorder %v27, 0
    %v31 = vsel %vm30, %v27, 0
    %vm32 = vcmp.lt.s32.totalorder %v29, 63
    %v33 = vsel %vm32, %v29, 63
    %vm34 = vcmp.lt.s32.totalorder %v31, 63
    %v35 = vsel %vm34, %v31, 63
    %v36 = vlaneseq
    %v37 = vand.u32 %v36, 127
    %38 = vset.pattern.permute.xlu0 0
    %39 = vperm.xlu0 %38, %v33
    %v40 = vpop.permute.xlu0 %39
    %41 = vset.pattern.permute.xlu0 0
    %42 = vperm.xlu0 %41, %v35
    %v43 = vpop.permute.xlu0 %42
    %vm44 = vcmp.eq.s32.totalorder %v40, %v37
    %vm45 = vcmp.eq.s32.totalorder %v43, %v37
    %v46 = vsel %vm44, 1.0, 0.0
    %v47 = vsel %vm45, 1.0, 0.0
    %v48 = vld [vmem:[#allocation2] sm:$0xff]
    %v49 = vld [vmem:[#allocation2 + $0x8] sm:$0xff]
    %v50 = vld [vmem:[#allocation2 + $0x10] sm:$0xff]
    %v51 = vld [vmem:[#allocation2 + $0x18] sm:$0xff]
    %v52 = vld [vmem:[#allocation2 + $0x20] sm:$0xff]
    %v53 = vld [vmem:[#allocation2 + $0x28] sm:$0xff]
    %v54 = vld [vmem:[#allocation2 + $0x30] sm:$0xff]
    %v55 = vld [vmem:[#allocation2 + $0x38] sm:$0xff]
    %vm56 = vcmask 523264
    %v58 = vsel %vm56, %v46, 0
    %v61 = vsel %vm56, %v47, 0
    %63 = vmatprep.subr.mxu0 0.0
    %v64 = vand.u32 %v48, 4294901760
    %65 = vmatpush1.msra.mxu0 %v64
    %66 = vmatprep.subr.mxu0 0.0
    %v67 = vand.u32 %v49, 4294901760
    %68 = vmatpush1.msra.mxu0 %v67
    %69 = vmatprep.subr.mxu0 0.0
    %v70 = vand.u32 %v50, 4294901760
    %71 = vmatpush1.msra.mxu0 %v70
    %72 = vmatprep.subr.mxu0 0.0
    %v73 = vand.u32 %v51, 4294901760
    %74 = vmatpush1.msra.mxu0 %v73
    %75 = vmatprep.subr.mxu0 0.0
    %v76 = vand.u32 %v52, 4294901760
    %77 = vmatpush1.msra.mxu0 %v76
    %78 = vmatprep.subr.mxu0 0.0
    %v79 = vand.u32 %v53, 4294901760
    %80 = vmatpush1.msra.mxu0 %v79
    %81 = vmatprep.subr.mxu0 0.0
    %v82 = vand.u32 %v54, 4294901760
    %83 = vmatpush1.msra.mxu0 %v82
    %84 = vmatprep.subr.mxu0 0.0
    %v85 = vand.u32 %v55, 4294901760
    %86 = vmatpush1.msra.mxu0 %v85
    %87 = vmatprep.subr.mxu0 0.0
    %88 = vmatpush1.msra.mxu0 0.0
    %89 = vmatprep.subr.mxu0 0.0
    %90 = vmatpush1.msra.mxu0 0.0
    %91 = vmatprep.subr.mxu0 0.0
    %92 = vmatpush1.msra.mxu0 0.0
    %93 = vmatprep.subr.mxu0 0.0
    %94 = vmatpush1.msra.mxu0 0.0
    %95 = vmatprep.subr.mxu0 0.0
    %96 = vmatpush1.msra.mxu0 0.0
    %97 = vmatprep.subr.mxu0 0.0
    %98 = vmatpush1.msra.mxu0 0.0
    %99 = vmatprep.subr.mxu0 0.0
    %100 = vmatpush1.msra.mxu0 0.0
    %101 = vmatprep.subr.mxu0 0.0
    %102 = vmatpush1.msra.mxu0 0.0
    %103 = vmatprep.subr.mxu0 0.0
    %104 = vmatpush1.msra.mxu0 0.0
    %105 = vmatprep.subr.mxu0 0.0
    %106 = vmatpush1.msra.mxu0 0.0
    %107 = vmatprep.subr.mxu0 0.0
    %108 = vmatpush1.msra.mxu0 0.0
    %109 = vmatprep.subr.mxu0 0.0
    %110 = vmatpush1.msra.mxu0 0.0
    %111 = vmatprep.subr.mxu0 0.0
    %112 = vmatpush1.msra.mxu0 0.0
    %113 = vmatprep.subr.mxu0 0.0
    %114 = vmatpush1.msra.mxu0 0.0
    %115 = vmatprep.subr.mxu0 0.0
    %116 = vmatpush1.msra.mxu0 0.0
    %117 = vmatprep.subr.mxu0 0.0
    %118 = vmatpush1.msra.mxu0 0.0
    %119 = vmatprep.subr.mxu0 0.0
    %120 = vmatpush1.msra.mxu0 0.0
    %121 = vmatprep.subr.mxu0 0.0
    %122 = vmatpush1.msra.mxu0 0.0
    %123 = vmatprep.subr.mxu0 0.0
    %124 = vmatpush1.msra.mxu0 0.0
    %125 = vmatprep.subr.mxu0 0.0
    %126 = vmatpush1.msra.mxu0 0.0
    %127 = vmatprep.subr.mxu0 0.0
    %128 = vmatpush1.msra.mxu0 0.0
    %129 = vmatprep.subr.mxu0 0.0
    %130 = vmatpush1.msra.mxu0 0.0
    %131 = vmatprep.subr.mxu0 0.0
    %132 = vmatpush1.msra.mxu0 0.0
    %133 = vmatprep.subr.mxu0 0.0
    %134 = vmatpush1.msra.mxu0 0.0
    %135 = vmatprep.mubr.f32.mxu0 0.0
    %v136 = vand.u32 %v58, 4294901760
    %v137 = vsub.f32 %v58, %v136
    %v138 = vand.u32 %v137, 4294901760
    %v139 = vsub.f32 %v137, %v138
    %v140 = vand.u32 %v139, 4294901760
    %141 = vmatmul.mubr.f32.gmra.mrb[0].mxu0 %v140
    %v142 = vpop.f32.mrb[0].mxu0
    %v143 = vadd.f32 0.0, %v142
    %v144 = vpop.f32.mrb[0].mxu0
    %145 = vmatprep.mubr.f32.mxu0 0.0
    %v146 = vand.u32 %v61, 4294901760
    %v147 = vsub.f32 %v61, %v146
    %v148 = vand.u32 %v147, 4294901760
    %v149 = vsub.f32 %v147, %v148
    %v150 = vand.u32 %v149, 4294901760
    %151 = vmatmul.mubr.f32.gmra.mrb[0].mxu0 %v150
    %v152 = vpop.f32.mrb[0].mxu0
    %v153 = vadd.f32 0.0, %v152
    %v154 = vpop.f32.mrb[0].mxu0
    %155 = vdwg.mxu0
    %156 = vmatprep.subr.mxu0 0.0
    %v157 = vand.u32 %v48, 4294901760
    %v158 = vsub.f32 %v48, %v157
    %v159 = vand.u32 %v158, 4294901760
    %v160 = vsub.f32 %v158, %v159
    %v161 = vand.u32 %v160, 4294901760
    %162 = vmatpush1.msra.mxu0 %v161
    %163 = vmatprep.subr.mxu0 0.0
    %v164 = vand.u32 %v49, 4294901760
    %v165 = vsub.f32 %v49, %v164
    %v166 = vand.u32 %v165, 4294901760
    %v167 = vsub.f32 %v165, %v166
    %v168 = vand.u32 %v167, 4294901760
    %169 = vmatpush1.msra.mxu0 %v168
    %170 = vmatprep.subr.mxu0 0.0
    %v171 = vand.u32 %v50, 4294901760
    %v172 = vsub.f32 %v50, %v171
    %v173 = vand.u32 %v172, 4294901760
    %v174 = vsub.f32 %v172, %v173
    %v175 = vand.u32 %v174, 4294901760
    %176 = vmatpush1.msra.mxu0 %v175
    %177 = vmatprep.subr.mxu0 0.0
    %v178 = vand.u32 %v51, 4294901760
    %v179 = vsub.f32 %v51, %v178
    %v180 = vand.u32 %v179, 4294901760
    %v181 = vsub.f32 %v179, %v180
    %v182 = vand.u32 %v181, 4294901760
    %183 = vmatpush1.msra.mxu0 %v182
    %184 = vmatprep.subr.mxu0 0.0
    %v185 = vand.u32 %v52, 4294901760
    %v186 = vsub.f32 %v52, %v185
    %v187 = vand.u32 %v186, 4294901760
    %v188 = vsub.f32 %v186, %v187
    %v189 = vand.u32 %v188, 4294901760
    %190 = vmatpush1.msra.mxu0 %v189
    %191 = vmatprep.subr.mxu0 0.0
    %v192 = vand.u32 %v53, 4294901760
    %v193 = vsub.f32 %v53, %v192
    %v194 = vand.u32 %v193, 4294901760
    %v195 = vsub.f32 %v193, %v194
    %v196 = vand.u32 %v195, 4294901760
    %197 = vmatpush1.msra.mxu0 %v196
    %198 = vmatprep.subr.mxu0 0.0
    %v199 = vand.u32 %v54, 4294901760
    %v200 = vsub.f32 %v54, %v199
    %v201 = vand.u32 %v200, 4294901760
    %v202 = vsub.f32 %v200, %v201
    %v203 = vand.u32 %v202, 4294901760
    %204 = vmatpush1.msra.mxu0 %v203
    %205 = vmatprep.subr.mxu0 0.0
    %v206 = vand.u32 %v55, 4294901760
    %v207 = vsub.f32 %v55, %v206
    %v208 = vand.u32 %v207, 4294901760
    %v209 = vsub.f32 %v207, %v208
    %v210 = vand.u32 %v209, 4294901760
    %211 = vmatpush1.msra.mxu0 %v210
    %212 = vmatprep.subr.mxu0 0.0
    %213 = vmatpush1.msra.mxu0 0.0
    %214 = vmatprep.subr.mxu0 0.0
    %215 = vmatpush1.msra.mxu0 0.0
    %216 = vmatprep.subr.mxu0 0.0
    %217 = vmatpush1.msra.mxu0 0.0
    %218 = vmatprep.subr.mxu0 0.0
    %219 = vmatpush1.msra.mxu0 0.0
    %220 = vmatprep.subr.mxu0 0.0
    %221 = vmatpush1.msra.mxu0 0.0
    %222 = vmatprep.subr.mxu0 0.0
    %223 = vmatpush1.msra.mxu0 0.0
    %224 = vmatprep.subr.mxu0 0.0
    %225 = vmatpush1.msra.mxu0 0.0
    %226 = vmatprep.subr.mxu0 0.0
    %227 = vmatpush1.msra.mxu0 0.0
    %228 = vmatprep.subr.mxu0 0.0
    %229 = vmatpush1.msra.mxu0 0.0
    %230 = vmatprep.subr.mxu0 0.0
    %231 = vmatpush1.msra.mxu0 0.0
    %232 = vmatprep.subr.mxu0 0.0
    %233 = vmatpush1.msra.mxu0 0.0
    %234 = vmatprep.subr.mxu0 0.0
    %235 = vmatpush1.msra.mxu0 0.0
    %236 = vmatprep.subr.mxu0 0.0
    %237 = vmatpush1.msra.mxu0 0.0
    %238 = vmatprep.subr.mxu0 0.0
    %239 = vmatpush1.msra.mxu0 0.0
    %240 = vmatprep.subr.mxu0 0.0
    %241 = vmatpush1.msra.mxu0 0.0
    %242 = vmatprep.subr.mxu0 0.0
    %243 = vmatpush1.msra.mxu0 0.0
    %244 = vmatprep.subr.mxu0 0.0
    %245 = vmatpush1.msra.mxu0 0.0
    %246 = vmatprep.subr.mxu0 0.0
    %247 = vmatpush1.msra.mxu0 0.0
    %248 = vmatprep.subr.mxu0 0.0
    %249 = vmatpush1.msra.mxu0 0.0
    %250 = vmatprep.subr.mxu0 0.0
    %251 = vmatpush1.msra.mxu0 0.0
    %252 = vmatprep.subr.mxu0 0.0
    %253 = vmatpush1.msra.mxu0 0.0
    %254 = vmatprep.subr.mxu0 0.0
    %255 = vmatpush1.msra.mxu0 0.0
    %256 = vmatprep.subr.mxu0 0.0
    %257 = vmatpush1.msra.mxu0 0.0
    %258 = vmatprep.subr.mxu0 0.0
    %259 = vmatpush1.msra.mxu0 0.0
    %260 = vmatprep.mubr.f32.mxu0 0.0
    %v261 = vand.u32 %v58, 4294901760
    %262 = vmatmul.mubr.f32.gmra.mrb[0].mxu0 %v261
    %v263 = vpop.f32.mrb[0].mxu0
    %v264 = vadd.f32 %v143, %v263
    %v265 = vpop.f32.mrb[0].mxu0
    %266 = vmatprep.mubr.f32.mxu0 0.0
    %v267 = vand.u32 %v61, 4294901760
    %268 = vmatmul.mubr.f32.gmra.mrb[0].mxu0 %v267
    %v269 = vpop.f32.mrb[0].mxu0
    %v270 = vadd.f32 %v153, %v269
    %v271 = vpop.f32.mrb[0].mxu0
    %272 = vdwg.mxu0
    %273 = vmatprep.subr.mxu0 0.0
    %v274 = vand.u32 %v48, 4294901760
    %v275 = vsub.f32 %v48, %v274
    %276 = vmatpush1.msra.mxu0 %v275
    %277 = vmatprep.subr.mxu0 0.0
    %v278 = vand.u32 %v49, 4294901760
    %v279 = vsub.f32 %v49, %v278
    %280 = vmatpush1.msra.mxu0 %v279
    %281 = vmatprep.subr.mxu0 0.0
    %v282 = vand.u32 %v50, 4294901760
    %v283 = vsub.f32 %v50, %v282
    %284 = vmatpush1.msra.mxu0 %v283
    %285 = vmatprep.subr.mxu0 0.0
    %v286 = vand.u32 %v51, 4294901760
    %v287 = vsub.f32 %v51, %v286
    %288 = vmatpush1.msra.mxu0 %v287
    %289 = vmatprep.subr.mxu0 0.0
    %v290 = vand.u32 %v52, 4294901760
    %v291 = vsub.f32 %v52, %v290
    %292 = vmatpush1.msra.mxu0 %v291
    %293 = vmatprep.subr.mxu0 0.0
    %v294 = vand.u32 %v53, 4294901760
    %v295 = vsub.f32 %v53, %v294
    %296 = vmatpush1.msra.mxu0 %v295
    %297 = vmatprep.subr.mxu0 0.0
    %v298 = vand.u32 %v54, 4294901760
    %v299 = vsub.f32 %v54, %v298
    %300 = vmatpush1.msra.mxu0 %v299
    %301 = vmatprep.subr.mxu0 0.0
    %v302 = vand.u32 %v55, 4294901760
    %v303 = vsub.f32 %v55, %v302
    %304 = vmatpush1.msra.mxu0 %v303
    %305 = vmatprep.subr.mxu0 0.0
    %306 = vmatpush1.msra.mxu0 0.0
    %307 = vmatprep.subr.mxu0 0.0
    %308 = vmatpush1.msra.mxu0 0.0
    %309 = vmatprep.subr.mxu0 0.0
    %310 = vmatpush1.msra.mxu0 0.0
    %311 = vmatprep.subr.mxu0 0.0
    %312 = vmatpush1.msra.mxu0 0.0
    %313 = vmatprep.subr.mxu0 0.0
    %314 = vmatpush1.msra.mxu0 0.0
    %315 = vmatprep.subr.mxu0 0.0
    %316 = vmatpush1.msra.mxu0 0.0
    %317 = vmatprep.subr.mxu0 0.0
    %318 = vmatpush1.msra.mxu0 0.0
    %319 = vmatprep.subr.mxu0 0.0
    %320 = vmatpush1.msra.mxu0 0.0
    %321 = vmatprep.subr.mxu0 0.0
    %322 = vmatpush1.msra.mxu0 0.0
    %323 = vmatprep.subr.mxu0 0.0
    %324 = vmatpush1.msra.mxu0 0.0
    %325 = vmatprep.subr.mxu0 0.0
    %326 = vmatpush1.msra.mxu0 0.0
    %327 = vmatprep.subr.mxu0 0.0
    %328 = vmatpush1.msra.mxu0 0.0
    %329 = vmatprep.subr.mxu0 0.0
    %330 = vmatpush1.msra.mxu0 0.0
    %331 = vmatprep.subr.mxu0 0.0
    %332 = vmatpush1.msra.mxu0 0.0
    %333 = vmatprep.subr.mxu0 0.0
    %334 = vmatpush1.msra.mxu0 0.0
    %335 = vmatprep.subr.mxu0 0.0
    %336 = vmatpush1.msra.mxu0 0.0
    %337 = vmatprep.subr.mxu0 0.0
    %338 = vmatpush1.msra.mxu0 0.0
    %339 = vmatprep.subr.mxu0 0.0
    %340 = vmatpush1.msra.mxu0 0.0
    %341 = vmatprep.subr.mxu0 0.0
    %342 = vmatpush1.msra.mxu0 0.0
    %343 = vmatprep.subr.mxu0 0.0
    %344 = vmatpush1.msra.mxu0 0.0
    %345 = vmatprep.subr.mxu0 0.0
    %346 = vmatpush1.msra.mxu0 0.0
    %347 = vmatprep.subr.mxu0 0.0
    %348 = vmatpush1.msra.mxu0 0.0
    %349 = vmatprep.subr.mxu0 0.0
    %350 = vmatpush1.msra.mxu0 0.0
    %351 = vmatprep.subr.mxu0 0.0
    %352 = vmatpush1.msra.mxu0 0.0
    %353 = vmatprep.mubr.f32.mxu0 0.0
    %v354 = vand.u32 %v58, 4294901760
    %v355 = vsub.f32 %v58, %v354
    %356 = vmatmul.mubr.f32.gmra.mrb[0].mxu0 %v355
    %v357 = vpop.f32.mrb[0].mxu0
    %v358 = vadd.f32 %v264, %v357
    %v359 = vpop.f32.mrb[0].mxu0
    %360 = vmatprep.mubr.f32.mxu0 0.0
    %v361 = vand.u32 %v61, 4294901760
    %v362 = vsub.f32 %v61, %v361
    %363 = vmatmul.mubr.f32.gmra.mrb[0].mxu0 %v362
    %v364 = vpop.f32.mrb[0].mxu0
    %v365 = vadd.f32 %v270, %v364
    %v366 = vpop.f32.mrb[0].mxu0
    %367 = vdwg.mxu0
    %368 = vmatprep.subr.mxu0 0.0
    %v369 = vand.u32 %v48, 4294901760
    %370 = vmatpush1.msra.mxu0 %v369
    %371 = vmatprep.subr.mxu0 0.0
    %v372 = vand.u32 %v49, 4294901760
    %373 = vmatpush1.msra.mxu0 %v372
    %374 = vmatprep.subr.mxu0 0.0
    %v375 = vand.u32 %v50, 4294901760
    %376 = vmatpush1.msra.mxu0 %v375
    %377 = vmatprep.subr.mxu0 0.0
    %v378 = vand.u32 %v51, 4294901760
    %379 = vmatpush1.msra.mxu0 %v378
    %380 = vmatprep.subr.mxu0 0.0
    %v381 = vand.u32 %v52, 4294901760
    %382 = vmatpush1.msra.mxu0 %v381
    %383 = vmatprep.subr.mxu0 0.0
    %v384 = vand.u32 %v53, 4294901760
    %385 = vmatpush1.msra.mxu0 %v384
    %386 = vmatprep.subr.mxu0 0.0
    %v387 = vand.u32 %v54, 4294901760
    %388 = vmatpush1.msra.mxu0 %v387
    %389 = vmatprep.subr.mxu0 0.0
    %v390 = vand.u32 %v55, 4294901760
    %391 = vmatpush1.msra.mxu0 %v390
    %392 = vmatprep.subr.mxu0 0.0
    %393 = vmatpush1.msra.mxu0 0.0
    %394 = vmatprep.subr.mxu0 0.0
    %395 = vmatpush1.msra.mxu0 0.0
    %396 = vmatprep.subr.mxu0 0.0
    %397 = vmatpush1.msra.mxu0 0.0
    %398 = vmatprep.subr.mxu0 0.0
    %399 = vmatpush1.msra.mxu0 0.0
    %400 = vmatprep.subr.mxu0 0.0
    %401 = vmatpush1.msra.mxu0 0.0
    %402 = vmatprep.subr.mxu0 0.0
    %403 = vmatpush1.msra.mxu0 0.0
    %404 = vmatprep.subr.mxu0 0.0
    %405 = vmatpush1.msra.mxu0 0.0
    %406 = vmatprep.subr.mxu0 0.0
    %407 = vmatpush1.msra.mxu0 0.0
    %408 = vmatprep.subr.mxu0 0.0
    %409 = vmatpush1.msra.mxu0 0.0
    %410 = vmatprep.subr.mxu0 0.0
    %411 = vmatpush1.msra.mxu0 0.0
    %412 = vmatprep.subr.mxu0 0.0
    %413 = vmatpush1.msra.mxu0 0.0
    %414 = vmatprep.subr.mxu0 0.0
    %415 = vmatpush1.msra.mxu0 0.0
    %416 = vmatprep.subr.mxu0 0.0
    %417 = vmatpush1.msra.mxu0 0.0
    %418 = vmatprep.subr.mxu0 0.0
    %419 = vmatpush1.msra.mxu0 0.0
    %420 = vmatprep.subr.mxu0 0.0
    %421 = vmatpush1.msra.mxu0 0.0
    %422 = vmatprep.subr.mxu0 0.0
    %423 = vmatpush1.msra.mxu0 0.0
    %424 = vmatprep.subr.mxu0 0.0
    %425 = vmatpush1.msra.mxu0 0.0
    %426 = vmatprep.subr.mxu0 0.0
    %427 = vmatpush1.msra.mxu0 0.0
    %428 = vmatprep.subr.mxu0 0.0
    %429 = vmatpush1.msra.mxu0 0.0
    %430 = vmatprep.subr.mxu0 0.0
    %431 = vmatpush1.msra.mxu0 0.0
    %432 = vmatprep.subr.mxu0 0.0
    %433 = vmatpush1.msra.mxu0 0.0
    %434 = vmatprep.subr.mxu0 0.0
    %435 = vmatpush1.msra.mxu0 0.0
    %436 = vmatprep.subr.mxu0 0.0
    %437 = vmatpush1.msra.mxu0 0.0
    %438 = vmatprep.subr.mxu0 0.0
    %439 = vmatpush1.msra.mxu0 0.0
    %440 = vmatprep.mubr.f32.mxu0 0.0
    %v441 = vand.u32 %v58, 4294901760
    %v442 = vsub.f32 %v58, %v441
    %v443 = vand.u32 %v442, 4294901760
    %444 = vmatmul.mubr.f32.gmra.mrb[0].mxu0 %v443
    %v445 = vpop.f32.mrb[0].mxu0
    %v446 = vadd.f32 %v358, %v445
    %v447 = vpop.f32.mrb[0].mxu0
    %448 = vmatprep.mubr.f32.mxu0 0.0
    %v449 = vand.u32 %v61, 4294901760
    %v450 = vsub.f32 %v61, %v449
    %v451 = vand.u32 %v450, 4294901760
    %452 = vmatmul.mubr.f32.gmra.mrb[0].mxu0 %v451
    %v453 = vpop.f32.mrb[0].mxu0
    %v454 = vadd.f32 %v365, %v453
    %v455 = vpop.f32.mrb[0].mxu0
    %456 = vdwg.mxu0
    %457 = vmatprep.subr.mxu0 0.0
    %v458 = vand.u32 %v48, 4294901760
    %v459 = vsub.f32 %v48, %v458
    %v460 = vand.u32 %v459, 4294901760
    %461 = vmatpush1.msra.mxu0 %v460
    %462 = vmatprep.subr.mxu0 0.0
    %v463 = vand.u32 %v49, 4294901760
    %v464 = vsub.f32 %v49, %v463
    %v465 = vand.u32 %v464, 4294901760
    %466 = vmatpush1.msra.mxu0 %v465
    %467 = vmatprep.subr.mxu0 0.0
    %v468 = vand.u32 %v50, 4294901760
    %v469 = vsub.f32 %v50, %v468
    %v470 = vand.u32 %v469, 4294901760
    %471 = vmatpush1.msra.mxu0 %v470
    %472 = vmatprep.subr.mxu0 0.0
    %v473 = vand.u32 %v51, 4294901760
    %v474 = vsub.f32 %v51, %v473
    %v475 = vand.u32 %v474, 4294901760
    %476 = vmatpush1.msra.mxu0 %v475
    %477 = vmatprep.subr.mxu0 0.0
    %v478 = vand.u32 %v52, 4294901760
    %v479 = vsub.f32 %v52, %v478
    %v480 = vand.u32 %v479, 4294901760
    %481 = vmatpush1.msra.mxu0 %v480
    %482 = vmatprep.subr.mxu0 0.0
    %v483 = vand.u32 %v53, 4294901760
    %v484 = vsub.f32 %v53, %v483
    %v485 = vand.u32 %v484, 4294901760
    %486 = vmatpush1.msra.mxu0 %v485
    %487 = vmatprep.subr.mxu0 0.0
    %v488 = vand.u32 %v54, 4294901760
    %v489 = vsub.f32 %v54, %v488
    %v490 = vand.u32 %v489, 4294901760
    %491 = vmatpush1.msra.mxu0 %v490
    %492 = vmatprep.subr.mxu0 0.0
    %v493 = vand.u32 %v55, 4294901760
    %v494 = vsub.f32 %v55, %v493
    %v495 = vand.u32 %v494, 4294901760
    %496 = vmatpush1.msra.mxu0 %v495
    %497 = vmatprep.subr.mxu0 0.0
    %498 = vmatpush1.msra.mxu0 0.0
    %499 = vmatprep.subr.mxu0 0.0
    %500 = vmatpush1.msra.mxu0 0.0
    %501 = vmatprep.subr.mxu0 0.0
    %502 = vmatpush1.msra.mxu0 0.0
    %503 = vmatprep.subr.mxu0 0.0
    %504 = vmatpush1.msra.mxu0 0.0
    %505 = vmatprep.subr.mxu0 0.0
    %506 = vmatpush1.msra.mxu0 0.0
    %507 = vmatprep.subr.mxu0 0.0
    %508 = vmatpush1.msra.mxu0 0.0
    %509 = vmatprep.subr.mxu0 0.0
    %510 = vmatpush1.msra.mxu0 0.0
    %511 = vmatprep.subr.mxu0 0.0
    %512 = vmatpush1.msra.mxu0 0.0
    %513 = vmatprep.subr.mxu0 0.0
    %514 = vmatpush1.msra.mxu0 0.0
    %515 = vmatprep.subr.mxu0 0.0
    %516 = vmatpush1.msra.mxu0 0.0
    %517 = vmatprep.subr.mxu0 0.0
    %518 = vmatpush1.msra.mxu0 0.0
    %519 = vmatprep.subr.mxu0 0.0
    %520 = vmatpush1.msra.mxu0 0.0
    %521 = vmatprep.subr.mxu0 0.0
    %522 = vmatpush1.msra.mxu0 0.0
    %523 = vmatprep.subr.mxu0 0.0
    %524 = vmatpush1.msra.mxu0 0.0
    %525 = vmatprep.subr.mxu0 0.0
    %526 = vmatpush1.msra.mxu0 0.0
    %527 = vmatprep.subr.mxu0 0.0
    %528 = vmatpush1.msra.mxu0 0.0
    %529 = vmatprep.subr.mxu0 0.0
    %530 = vmatpush1.msra.mxu0 0.0
    %531 = vmatprep.subr.mxu0 0.0
    %532 = vmatpush1.msra.mxu0 0.0
    %533 = vmatprep.subr.mxu0 0.0
    %534 = vmatpush1.msra.mxu0 0.0
    %535 = vmatprep.subr.mxu0 0.0
    %536 = vmatpush1.msra.mxu0 0.0
    %537 = vmatprep.subr.mxu0 0.0
    %538 = vmatpush1.msra.mxu0 0.0
    %539 = vmatprep.subr.mxu0 0.0
    %540 = vmatpush1.msra.mxu0 0.0
    %541 = vmatprep.subr.mxu0 0.0
    %542 = vmatpush1.msra.mxu0 0.0
    %543 = vmatprep.subr.mxu0 0.0
    %544 = vmatpush1.msra.mxu0 0.0
    %545 = vmatprep.mubr.f32.mxu0 0.0
    %v546 = vand.u32 %v58, 4294901760
    %547 = vmatmul.mubr.f32.gmra.mrb[0].mxu0 %v546
    %v548 = vpop.f32.mrb[0].mxu0
    %v549 = vadd.f32 %v446, %v548
    %v550 = vpop.f32.mrb[0].mxu0
    %551 = vmatprep.mubr.f32.mxu0 0.0
    %v552 = vand.u32 %v61, 4294901760
    %553 = vmatmul.mubr.f32.gmra.mrb[0].mxu0 %v552
    %v554 = vpop.f32.mrb[0].mxu0
    %v555 = vadd.f32 %v454, %v554
    %v556 = vpop.f32.mrb[0].mxu0
    %557 = vdwg.mxu0
    %558 = vmatprep.subr.mxu0 0.0
    %v559 = vand.u32 %v48, 4294901760
    %560 = vmatpush1.msra.mxu0 %v559
    %561 = vmatprep.subr.mxu0 0.0
    %v562 = vand.u32 %v49, 4294901760
    %563 = vmatpush1.msra.mxu0 %v562
    %564 = vmatprep.subr.mxu0 0.0
    %v565 = vand.u32 %v50, 4294901760
    %566 = vmatpush1.msra.mxu0 %v565
    %567 = vmatprep.subr.mxu0 0.0
    %v568 = vand.u32 %v51, 4294901760
    %569 = vmatpush1.msra.mxu0 %v568
    %570 = vmatprep.subr.mxu0 0.0
    %v571 = vand.u32 %v52, 4294901760
    %572 = vmatpush1.msra.mxu0 %v571
    %573 = vmatprep.subr.mxu0 0.0
    %v574 = vand.u32 %v53, 4294901760
    %575 = vmatpush1.msra.mxu0 %v574
    %576 = vmatprep.subr.mxu0 0.0
    %v577 = vand.u32 %v54, 4294901760
    %578 = vmatpush1.msra.mxu0 %v577
    %579 = vmatprep.subr.mxu0 0.0
    %v580 = vand.u32 %v55, 4294901760
    %581 = vmatpush1.msra.mxu0 %v580
    %582 = vmatprep.subr.mxu0 0.0
    %583 = vmatpush1.msra.mxu0 0.0
    %584 = vmatprep.subr.mxu0 0.0
    %585 = vmatpush1.msra.mxu0 0.0
    %586 = vmatprep.subr.mxu0 0.0
    %587 = vmatpush1.msra.mxu0 0.0
    %588 = vmatprep.subr.mxu0 0.0
    %589 = vmatpush1.msra.mxu0 0.0
    %590 = vmatprep.subr.mxu0 0.0
    %591 = vmatpush1.msra.mxu0 0.0
    %592 = vmatprep.subr.mxu0 0.0
    %593 = vmatpush1.msra.mxu0 0.0
    %594 = vmatprep.subr.mxu0 0.0
    %595 = vmatpush1.msra.mxu0 0.0
    %596 = vmatprep.subr.mxu0 0.0
    %597 = vmatpush1.msra.mxu0 0.0
    %598 = vmatprep.subr.mxu0 0.0
    %599 = vmatpush1.msra.mxu0 0.0
    %600 = vmatprep.subr.mxu0 0.0
    %601 = vmatpush1.msra.mxu0 0.0
    %602 = vmatprep.subr.mxu0 0.0
    %603 = vmatpush1.msra.mxu0 0.0
    %604 = vmatprep.subr.mxu0 0.0
    %605 = vmatpush1.msra.mxu0 0.0
    %606 = vmatprep.subr.mxu0 0.0
    %607 = vmatpush1.msra.mxu0 0.0
    %608 = vmatprep.subr.mxu0 0.0
    %609 = vmatpush1.msra.mxu0 0.0
    %610 = vmatprep.subr.mxu0 0.0
    %611 = vmatpush1.msra.mxu0 0.0
    %612 = vmatprep.subr.mxu0 0.0
    %613 = vmatpush1.msra.mxu0 0.0
    %614 = vmatprep.subr.mxu0 0.0
    %615 = vmatpush1.msra.mxu0 0.0
    %616 = vmatprep.subr.mxu0 0.0
    %617 = vmatpush1.msra.mxu0 0.0
    %618 = vmatprep.subr.mxu0 0.0
    %619 = vmatpush1.msra.mxu0 0.0
    %620 = vmatprep.subr.mxu0 0.0
    %621 = vmatpush1.msra.mxu0 0.0
    %622 = vmatprep.subr.mxu0 0.0
    %623 = vmatpush1.msra.mxu0 0.0
    %624 = vmatprep.subr.mxu0 0.0
    %625 = vmatpush1.msra.mxu0 0.0
    %626 = vmatprep.subr.mxu0 0.0
    %627 = vmatpush1.msra.mxu0 0.0
    %628 = vmatprep.subr.mxu0 0.0
    %629 = vmatpush1.msra.mxu0 0.0
    %630 = vmatprep.mubr.f32.mxu0 0.0
    %v631 = vand.u32 %v58, 4294901760
    %632 = vmatmul.mubr.f32.gmra.mrb[0].mxu0 %v631
    %v633 = vpop.f32.mrb[0].mxu0
    %v634 = vadd.f32 %v549, %v633
    %v635 = vpop.f32.mrb[0].mxu0
    %636 = vmatprep.mubr.f32.mxu0 0.0
    %v637 = vand.u32 %v61, 4294901760
    %638 = vmatmul.mubr.f32.gmra.mrb[0].mxu0 %v637
    %v639 = vpop.f32.mrb[0].mxu0
    %v640 = vadd.f32 %v555, %v639
    %v641 = vpop.f32.mrb[0].mxu0
    %642 = vdwg.mxu0
    %v643 = vmul.f32 %v634, 11.313708
    %v644 = vmul.f32 %v640, 11.313708
    %645 = vst [vmem:[#allocation5] sm:$0xff] %v643
    %646 = vst [vmem:[#allocation5 + $0x8] sm:$0xff] %v644
    // Predicated region
    $region14: #{tpu_custom_call.1} parent=1 // pred_check
      _
    $region15: #{tpu_custom_call.1} parent=1 // pred_check_branch
      %648 = sbr.rel (0) target = $region17
    $region16: #{tpu_custom_call.1} parent=1 // pred_region
      %s650 = ssub.s32 256, 256
      %651 = vsyncadd [#allocation4], %s650
      %s652 = sshll.u32 [#allocation5], 4
      %s653 = int_to_ptr.vmem [resolvable:$true] %s652
      %658 = dma.vmem_to_hbm [thread:$0]  %s653, 256, %s2, [#allocation4], 128, 128, 8
    $region17: #{tpu_custom_call.1} parent=1 // pred_fallthru
      _
    // Predicated region
    $region18: #{tpu_custom_call.1} parent=1 // pred_check
      _
    $region19: #{tpu_custom_call.1} parent=1 // pred_check_branch
      %660 = sbr.rel (0) target = $region21
    $region20: #{tpu_custom_call.1} parent=1 // pred_region
      %661 = dma.done [#allocation4], 256
    $region21: #{tpu_custom_call.1} parent=1 // pred_fallthru
      _
    %662 = vsyncpa [#allocation3], 1
    %663 = vsyncpa [#allocation4], 1

</llo_original>
